<compile_context>
chip_gen: v7x
topology: tpu7x:2x2x1
jax: 0.10.0
libtpu: 0.0.40
codegen_flags: <defaults>
</compile_context>

<pallas_src>
import functools
import math

import jax
import jax.numpy as jnp
from jax import lax
from jax.experimental import pallas as pl
from jax.experimental.pallas import tpu as pltpu


def _bert_embeddings_kernel(ids_ref, word_ref, pos_ref, type_ref, gamma_ref,
                            beta_ref, o_ref, *, eps, seq_len, num_types):
    # ids_ref:   (TN, 2) int32  -- columns: [word_id, token_type_id]
    # word_ref:  (V, H)  float  -- resident word table
    # pos_ref:   (S, H)  float  -- resident position slice (rows 0..S-1)
    # type_ref:  (T, H)  float  -- resident token-type table
    # gamma_ref / beta_ref: (1, H)
    # o_ref:     (TN, H)        -- TN is a multiple of S (whole sequences per tile)
    tn, hidden = o_ref.shape
    vocab = word_ref.shape[0]

    # --- word embedding: one-hot @ table on the MXU (RNA vocab is tiny) -------------
    # TODO(synk): at production vocab sizes (V ~ 30k) replace this with a real gather
    # (word table in HBM via memory_space=pl.ANY + per-tile row DMAs, or K-tiled with
    # an f32 accumulator); the one-hot matmul is only appropriate at this V.
    wid = ids_ref[:, 0:1]                                         # (TN, 1)
    col = lax.broadcasted_iota(jnp.int32, (tn, vocab), 1)
    onehot = (col == wid).astype(word_ref.dtype)
    emb = jnp.dot(onehot, word_ref[...], preferred_element_type=jnp.float32)

    # --- position embedding: deterministic, streamed/resident -- just add ----------
    pos = pos_ref[...].astype(jnp.float32)                        # (S, H)
    reps = tn // seq_len
    if reps > 1:
        pos = jnp.concatenate([pos] * reps, axis=0)               # (TN, H), VPU copy
    emb = emb + pos

    # --- token-type embedding: VPU select between resident rows (T == 2) -----------
    tid = ids_ref[:, 1:2]                                         # (TN, 1)
    ttbl = type_ref[...].astype(jnp.float32)                      # (T, H)
    if num_types == 2:
        emb = emb + jnp.where(tid == 0, ttbl[0:1, :], ttbl[1:2, :])
    else:
        tcol = lax.broadcasted_iota(jnp.int32, (tn, num_types), 1)
        toh = (tcol == tid).astype(type_ref.dtype)
        emb = emb + jnp.dot(toh, type_ref[...],
                            preferred_element_type=jnp.float32)

    # --- BertLayerNorm over the hidden (lane) axis, eps inside the sqrt ------------
    u = jnp.mean(emb, axis=-1, keepdims=True)
    c = emb - u
    var = jnp.mean(c * c, axis=-1, keepdims=True)
    xn = c * lax.rsqrt(var + eps)                                 # EUP slot
    out = (gamma_ref[...].astype(jnp.float32) * xn
           + beta_ref[...].astype(jnp.float32))

    # TODO(synk): training-mode dropout (pltpu.prng_seed / prng_random_bits + keep
    # mask) omitted; inference-mode dropout is the identity.
    o_ref[...] = out.astype(o_ref.dtype)


def _choose_token_tile(n_tokens, seq_len, target):
    """Token tile: multiple of lcm(S, 8) (whole sequences + sublane alignment),
    ~`target` rows, and never a single full-extent block when N allows >= 2 steps."""
    base = (seq_len * 8) // math.gcd(seq_len, 8)      # lcm(S, 8)
    if n_tokens < base:
        return n_tokens                               # tiny problem: one full block
    tn = min(max(1, target // base) * base, (n_tokens // base) * base)
    if tn >= n_tokens and n_tokens >= 2 * base:
        # keep >= 2 grid steps so v7x's 2 TensorCores both get work
        tn = (n_tokens // (2 * base)) * base
    return tn


def bert_embeddings(input_ids, token_type_ids, word_table, pos_table, type_table,
                    gamma, beta, *, eps=1e-12, block_tokens=512):
    """input_ids, token_type_ids: [B, S] int; tables: [V,H], [P,H], [T,H]; gamma/beta: [H]."""
    B, S = input_ids.shape
    V, H = word_table.shape
    T = type_table.shape[0]
    assert pos_table.shape[0] >= S and pos_table.shape[1] == H
    N = B * S

    tn = _choose_token_tile(N, S, block_tokens)
    grid = (pl.cdiv(N, tn),)      # padded tail rows are dropped at writeback

    # Tiny per-call glue: pack the two id streams into a single (N, 2) int32 array.
    ids_packed = jnp.stack(
        [input_ids.astype(jnp.int32).reshape(-1),
         token_type_ids.astype(jnp.int32).reshape(-1)],
        axis=-1)                                                  # (N, 2)

    pos_slice = pos_table[:S]                                     # (S, H)
    gamma2d = gamma.reshape(1, H)
    beta2d = beta.reshape(1, H)

    kernel = functools.partial(_bert_embeddings_kernel, eps=eps, seq_len=S,
                               num_types=T)

    out = pl.pallas_call(
        kernel,
        out_shape=jax.ShapeDtypeStruct((N, H), word_table.dtype),
        grid=grid,
        in_specs=[
            pl.BlockSpec((tn, 2), lambda i: (i, 0)),   # streamed packed ids
            pl.BlockSpec((V, H), lambda i: (0, 0)),    # resident word table
            pl.BlockSpec((S, H), lambda i: (0, 0)),    # resident position slice
            pl.BlockSpec((T, H), lambda i: (0, 0)),    # resident type table
            pl.BlockSpec((1, H), lambda i: (0, 0)),    # resident gamma
            pl.BlockSpec((1, H), lambda i: (0, 0)),    # resident beta
        ],
        out_specs=pl.BlockSpec((tn, H), lambda i: (i, 0)),  # lane-dense (H % 128 == 0)
        compiler_params=pltpu.CompilerParams(
            dimension_semantics=("parallel",),
            vmem_limit_bytes=32 * 1024 * 1024),
    )(ids_packed, word_table, pos_slice, type_table, gamma2d, beta2d)

    return out.reshape(B, S, H)


if __name__ == "__main__":
    batch, seq = 8, 16
    hidden = 128          # lane-dense output (multiple of 128)
    vocab = 8             # RNA-ish token vocabulary
    max_pos = 32
    type_vocab = 2

    key = jax.random.PRNGKey(0)
    k_ids, k_tt, k_w, k_p, k_t, k_g, k_b = jax.random.split(key, 7)

    input_ids = jax.random.randint(k_ids, (batch, seq), 0, vocab, dtype=jnp.int32)
    token_type_ids = jax.random.randint(k_tt, (batch, seq), 0, type_vocab,
                                        dtype=jnp.int32)

    word_table = 0.02 * jax.random.normal(k_w, (vocab, hidden), dtype=jnp.float32)
    word_table = word_table.at[0].set(0.0)       # padding_idx=0 row
    pos_table = 0.02 * jax.random.normal(k_p, (max_pos, hidden), dtype=jnp.float32)
    type_table = 0.02 * jax.random.normal(k_t, (type_vocab, hidden),
                                          dtype=jnp.float32)
    gamma = 1.0 + 0.1 * jax.random.normal(k_g, (hidden,), dtype=jnp.float32)
    beta = 0.1 * jax.random.normal(k_b, (hidden,), dtype=jnp.float32)

    out = bert_embeddings(input_ids, token_type_ids, word_table, pos_table,
                          type_table, gamma, beta)
    out = jax.block_until_ready(out)

    # Pure-JAX reference of the PyTorch forward (dropout = identity at inference).
    we = word_table[input_ids]
    pe = pos_table[jnp.arange(seq)][None, :, :]
    te = type_table[token_type_ids]
    x = we + pe + te
    u = x.mean(-1, keepdims=True)
    s = ((x - u) ** 2).mean(-1, keepdims=True)
    ref = gamma * ((x - u) / jnp.sqrt(s + 1e-12)) + beta

    assert out.shape == (batch, seq, hidden)
    err = float(jnp.max(jnp.abs(out - ref)))
    assert jnp.allclose(out, ref, atol=1e-4, rtol=1e-4), err

    print("KERNEL_OK")
</pallas_src>

<mosaic_0001>
module attributes {stable_mosaic.version = 11 : i64} {
  func.func @_bert_embeddings_kernel(%arg0: i32, %arg1: memref<64x2xi32, #tpu.memory_space<vmem>>, %arg2: memref<8x128xf32, #tpu.memory_space<vmem>>, %arg3: memref<16x128xf32, #tpu.memory_space<vmem>>, %arg4: memref<2x128xf32, #tpu.memory_space<vmem>>, %arg5: memref<1x128xf32, #tpu.memory_space<vmem>>, %arg6: memref<1x128xf32, #tpu.memory_space<vmem>>, %arg7: memref<64x128xf32, #tpu.memory_space<vmem>>) attributes {dimension_semantics = [#tpu.dimension_semantics<parallel>], iteration_bounds = array<i64: 2>, scalar_prefetch = 0 : i64, scratch_operands = 0 : i64, tpu.core_type = #tpu.core_type<tc>, window_params = [{transform_indices = @transform_0, window_bounds = array<i64: 64, 2>}, {pipeline_mode = #tpu.pipeline_mode<synchronous>, transform_indices = @transform_1, window_bounds = array<i64: 8, 128>}, {pipeline_mode = #tpu.pipeline_mode<synchronous>, transform_indices = @transform_2, window_bounds = array<i64: 16, 128>}, {pipeline_mode = #tpu.pipeline_mode<synchronous>, transform_indices = @transform_3, window_bounds = array<i64: 2, 128>}, {pipeline_mode = #tpu.pipeline_mode<synchronous>, transform_indices = @transform_4, window_bounds = array<i64: 1, 128>}, {pipeline_mode = #tpu.pipeline_mode<synchronous>, transform_indices = @transform_5, window_bounds = array<i64: 1, 128>}, {transform_indices = @transform_6, window_bounds = array<i64: 64, 128>}]} {
    %c0 = arith.constant 0 : index
    %c0_0 = arith.constant 0 : index
    %0 = vector.load %arg1[%c0, %c0_0] : memref<64x2xi32, #tpu.memory_space<vmem>>, vector<64x1xi32>
    %1 = tpu.iota {dimensions = array<i32: 1>} : vector<64x8xi32>
    %2 = vector.broadcast %0 : vector<64x1xi32> to vector<64x8xi32>
    %3 = arith.cmpi eq, %1, %2 : vector<64x8xi32>
    %4 = arith.extui %3 : vector<64x8xi1> to vector<64x8xi32>
    %5 = arith.sitofp %4 : vector<64x8xi32> to vector<64x8xf32>
    %c0_1 = arith.constant 0 : index
    %c0_2 = arith.constant 0 : index
    %6 = vector.load %arg2[%c0_1, %c0_2] : memref<8x128xf32, #tpu.memory_space<vmem>>, vector<8x128xf32>
    %cst = arith.constant dense<0.000000e+00> : vector<64x128xf32>
    %7 = tpu.matmul %5, %6, %cst {dimension_numbers = #tpu.dot_dimension_numbers<[1], [0], [0], [1], [0, 0, 1, 1], [], []>} : vector<64x8xf32>, vector<8x128xf32>, vector<64x128xf32> -> vector<64x128xf32>
    %c0_3 = arith.constant 0 : index
    %c0_4 = arith.constant 0 : index
    %8 = vector.load %arg3[%c0_3, %c0_4] : memref<16x128xf32, #tpu.memory_space<vmem>>, vector<16x128xf32>
    %9 = tpu.concatenate %8, %8, %8, %8 in 0 : vector<16x128xf32>, vector<16x128xf32>, vector<16x128xf32>, vector<16x128xf32> -> vector<64x128xf32>
    %10 = arith.addf %7, %9 : vector<64x128xf32>
    %c0_5 = arith.constant 0 : index
    %c1 = arith.constant 1 : index
    %11 = vector.load %arg1[%c0_5, %c1] : memref<64x2xi32, #tpu.memory_space<vmem>>, vector<64x1xi32>
    %c0_6 = arith.constant 0 : index
    %c0_7 = arith.constant 0 : index
    %12 = vector.load %arg4[%c0_6, %c0_7] : memref<2x128xf32, #tpu.memory_space<vmem>>, vector<2x128xf32>
    %c0_i32 = arith.constant 0 : i32
    %13 = vector.broadcast %c0_i32 : i32 to vector<64x1xi32>
    %14 = arith.cmpi eq, %11, %13 : vector<64x1xi32>
    %15 = vector.extract_strided_slice %12 {offsets = [0, 0], sizes = [1, 128], strides = [1, 1]} : vector<2x128xf32> to vector<1x128xf32>
    %16 = vector.extract_strided_slice %12 {offsets = [1, 0], sizes = [1, 128], strides = [1, 1]} : vector<2x128xf32> to vector<1x128xf32>
    %17 = vector.shape_cast %14 : vector<64x1xi1> to vector<64x1xi1>
    %18 = vector.broadcast %17 : vector<64x1xi1> to vector<64x128xi1>
    %19 = vector.shape_cast %15 : vector<1x128xf32> to vector<1x128xf32>
    %20 = vector.broadcast %19 : vector<1x128xf32> to vector<64x128xf32>
    %21 = vector.shape_cast %16 : vector<1x128xf32> to vector<1x128xf32>
    %22 = vector.broadcast %21 : vector<1x128xf32> to vector<64x128xf32>
    %23 = arith.select %18, %20, %22 : vector<64x128xi1>, vector<64x128xf32>
    %24 = arith.addf %10, %23 : vector<64x128xf32>
    %cst_8 = arith.constant dense<0.000000e+00> : vector<64xf32>
    %25 = vector.multi_reduction <add>, %24, %cst_8 [1] : vector<64x128xf32> to vector<64xf32>
    %26 = vector.shape_cast %25 : vector<64xf32> to vector<64x1xf32>
    %cst_9 = arith.constant 1.280000e+02 : f32
    %27 = vector.broadcast %cst_9 : f32 to vector<64x1xf32>
    %28 = arith.divf %26, %27 : vector<64x1xf32>
    %29 = vector.broadcast %28 : vector<64x1xf32> to vector<64x128xf32>
    %30 = arith.subf %24, %29 : vector<64x128xf32>
    %31 = arith.mulf %30, %30 : vector<64x128xf32>
    %cst_10 = arith.constant dense<0.000000e+00> : vector<64xf32>
    %32 = vector.multi_reduction <add>, %31, %cst_10 [1] : vector<64x128xf32> to vector<64xf32>
    %33 = vector.shape_cast %32 : vector<64xf32> to vector<64x1xf32>
    %cst_11 = arith.constant 1.280000e+02 : f32
    %34 = vector.broadcast %cst_11 : f32 to vector<64x1xf32>
    %35 = arith.divf %33, %34 : vector<64x1xf32>
    %cst_12 = arith.constant 9.99999996E-13 : f32
    %36 = vector.broadcast %cst_12 : f32 to vector<64x1xf32>
    %37 = arith.addf %35, %36 : vector<64x1xf32>
    %38 = math.rsqrt %37 : vector<64x1xf32>
    %39 = vector.broadcast %38 : vector<64x1xf32> to vector<64x128xf32>
    %40 = arith.mulf %30, %39 : vector<64x128xf32>
    %c0_13 = arith.constant 0 : index
    %c0_14 = arith.constant 0 : index
    %41 = vector.load %arg5[%c0_13, %c0_14] : memref<1x128xf32, #tpu.memory_space<vmem>>, vector<1x128xf32>
    %42 = vector.broadcast %41 : vector<1x128xf32> to vector<64x128xf32>
    %43 = arith.mulf %42, %40 : vector<64x128xf32>
    %c0_15 = arith.constant 0 : index
    %c0_16 = arith.constant 0 : index
    %44 = vector.load %arg6[%c0_15, %c0_16] : memref<1x128xf32, #tpu.memory_space<vmem>>, vector<1x128xf32>
    %45 = vector.broadcast %44 : vector<1x128xf32> to vector<64x128xf32>
    %46 = arith.addf %43, %45 : vector<64x128xf32>
    %c0_17 = arith.constant 0 : index
    %c0_18 = arith.constant 0 : index
    %47 = vector.load %arg7[%c0_17, %c0_18] : memref<64x128xf32, #tpu.memory_space<vmem>>, vector<64x128xf32>
    tpu.vector_store %arg7[%c0_17, %c0_18], %46 {strides = array<i32>} : memref<64x128xf32, #tpu.memory_space<vmem>>, vector<64x128xf32>,
    return
  }
  func.func @transform_0(%arg0: i32) -> (i32, i32) {
    %c0_i32 = arith.constant 0 : i32
    %c0_i32_0 = arith.constant 0 : i32
    return %arg0, %c0_i32 : i32, i32
  }
  func.func @transform_1(%arg0: i32) -> (i32, i32) {
    %c0_i32 = arith.constant 0 : i32
    %c0_i32_0 = arith.constant 0 : i32
    %c0_i32_1 = arith.constant 0 : i32
    return %c0_i32, %c0_i32_0 : i32, i32
  }
  func.func @transform_2(%arg0: i32) -> (i32, i32) {
    %c0_i32 = arith.constant 0 : i32
    %c0_i32_0 = arith.constant 0 : i32
    %c0_i32_1 = arith.constant 0 : i32
    return %c0_i32, %c0_i32_0 : i32, i32
  }
  func.func @transform_3(%arg0: i32) -> (i32, i32) {
    %c0_i32 = arith.constant 0 : i32
    %c0_i32_0 = arith.constant 0 : i32
    %c0_i32_1 = arith.constant 0 : i32
    return %c0_i32, %c0_i32_0 : i32, i32
  }
  func.func @transform_4(%arg0: i32) -> (i32, i32) {
    %c0_i32 = arith.constant 0 : i32
    %c0_i32_0 = arith.constant 0 : i32
    %c0_i32_1 = arith.constant 0 : i32
    return %c0_i32, %c0_i32_0 : i32, i32
  }
  func.func @transform_5(%arg0: i32) -> (i32, i32) {
    %c0_i32 = arith.constant 0 : i32
    %c0_i32_0 = arith.constant 0 : i32
    %c0_i32_1 = arith.constant 0 : i32
    return %c0_i32, %c0_i32_0 : i32, i32
  }
  func.func @transform_6(%arg0: i32) -> (i32, i32) {
    %c0_i32 = arith.constant 0 : i32
    %c0_i32_0 = arith.constant 0 : i32
    return %arg0, %c0_i32 : i32, i32
  }
}

</mosaic_0001>

<llo_original>
// kernel: tpu_custom_call.1
$region0: #{tpu_custom_call.1}
  #allocation0 [shape = 'u32[]', space=smem, size = 0x4, offset = 0x4, fixed_abs, tag = 'smem constant byte address 0x4 - core index']
  #allocation1 [shape = 'u32[144,128]{1,0:T(1,128)}', space=vmem, size = 0x12000, scoped, tag = 'internal scratch']
  %s0 = inlined_call_operand.vmem [shape: s32[128,2], index: 0, kind: input, shape index: {}]
  %s1 = inlined_call_operand.vmem [shape: f32[8,128], index: 1, kind: input, shape index: {}]
  %s2 = inlined_call_operand.vmem [shape: f32[16,128], index: 2, kind: input, shape index: {}]
  %s3 = inlined_call_operand.vmem [shape: f32[2,128], index: 3, kind: input, shape index: {}]
  %s4 = inlined_call_operand.vmem [shape: f32[1,128], index: 4, kind: input, shape index: {}]
  %s5 = inlined_call_operand.vmem [shape: f32[1,128], index: 5, kind: input, shape index: {}]
  %s6 = inlined_call_operand.hbm [shape: f32[128,128], index: 6, kind: output, shape index: {}]
  %s7 = sld [smem:[#allocation0]]
  $region57: #{tpu_custom_call.1} parent=0
    _
  %s9 = ssub.s32 1, %s7
  %s10 = scalar_select 0, %s9, %s7
  $region1: #{tpu_custom_call.1} parent=0
    #allocation2 [shape = 'u8[65536]{0}', space=vmem, size = 0x10000, scoped, tag = 'output window, operand 0']
    #allocation3 [shape = 's32[2]{0}', space=sflag, size = 0x8, scoped, tag = 'scoped memory for tpu_custom_call.1']
    %11 = vsyncpa [#allocation3], 0
    %s12 = scalar_lea.sflag [#allocation3], 1
    %13 = vsyncpa %s12, 0
    loop: start=0, step=1, limit=4
    $region2: #{tpu_custom_call.1} parent=1 // loop_pre_header
      _
    $region3: #{tpu_custom_call.1} parent=1 // loop_header
      %s15 = sphi 0, %s19
      %p16 = scmp.ge.s32.totalorder %s15, 4
      %s25 = sphi 0, %s27
      %s28 = sphi 0, %s25
      %s29 = sphi 0, %s28
      %s45 = sphi 0, %s29
      %s49 = sphi 0, %s49
      %s51 = sphi 0, %s49
      %s52 = sphi 0, %s51
      %s66 = sphi 0, %s52
      %s70 = sphi 0, %s70
      %s72 = sphi 0, %s70
      %s73 = sphi 0, %s72
      %s87 = sphi 0, %s73
      %s91 = sphi 0, %s91
      %s93 = sphi 0, %s91
      %s94 = sphi 0, %s93
      %s108 = sphi 0, %s94
      %s112 = sphi 0, %s112
      %s114 = sphi 0, %s112
      %s115 = sphi 0, %s114
      %s129 = sphi 0, %s115
      %s133 = sphi 0, %s133
      %s135 = sphi 0, %s133
      %s136 = sphi 0, %s135
      %s150 = sphi 0, %s136
      %s156 = sphi 0, %s158
      %s159 = sphi 0, %s156
      %s160 = sphi 0, %s159
      %s176 = sphi 0, %s160
    $region4: #{tpu_custom_call.1} parent=1 // loop_header_branch
      %18 = sbr.rel (%p16) target = $region8
    $region5: #{tpu_custom_call.1} parent=1 // loop_body
      %s20 = ssub.s32 %s15, 1
      %s21 = ssub.s32 %s15, 2
      %s22 = sadd.s32 %s15, 1
      %s23 = ssub.s32 %s15, %s22
      %p24 = scmp.eq.s32.totalorder %s23, 0
      %s26 = sadd.s32 %s25, 1
      %s27 = scalar_select %p24, %s25, %s26
      %p30 = pneg %p24
      %p31 = scmp.eq.s32.totalorder %s15, 1
      %p32 = por %p30, %p31
      %p33 = scmp.ne.s32.totalorder %s25, %s28
      %p34 = scmp.eq.s32.totalorder %s15, 0
      %p35 = por %p33, %p34
      %p36 = scmp.ne.s32.totalorder %s25, %s28
      %p37 = scmp.eq.s32.totalorder %s20, 1
      %p38 = por %p36, %p37
      %p39 = scmp.ne.s32.totalorder %s28, %s29
      %p40 = scmp.eq.s32.totalorder %s20, 0
      %p41 = por %p39, %p40
      %p42 = scmp.ne.s32.totalorder %s28, %s29
      %p43 = scmp.eq.s32.totalorder %s21, 1
      %p44 = por %p42, %p43
      %p46 = scmp.ne.s32.totalorder %s29, %s45
      %p47 = scmp.eq.s32.totalorder %s21, 0
      %p48 = por %p46, %p47
      %s50 = sadd.s32 %s49, 1
      %p53 = scmp.eq.s32.totalorder %s15, 1
      %p54 = scmp.ne.s32.totalorder %s49, %s51
      %p55 = scmp.eq.s32.totalorder %s15, 0
      %p56 = por %p54, %p55
      %p57 = scmp.ne.s32.totalorder %s49, %s51
      %p58 = scmp.eq.s32.totalorder %s20, 1
      %p59 = por %p57, %p58
      %p60 = scmp.ne.s32.totalorder %s51, %s52
      %p61 = scmp.eq.s32.totalorder %s20, 0
      %p62 = por %p60, %p61
      %p63 = scmp.ne.s32.totalorder %s51, %s52
      %p64 = scmp.eq.s32.totalorder %s21, 1
      %p65 = por %p63, %p64
      %p67 = scmp.ne.s32.totalorder %s52, %s66
      %p68 = scmp.eq.s32.totalorder %s21, 0
      %p69 = por %p67, %p68
      %s71 = sadd.s32 %s70, 1
      %p74 = scmp.eq.s32.totalorder %s15, 1
      %p75 = scmp.ne.s32.totalorder %s70, %s72
      %p76 = scmp.eq.s32.totalorder %s15, 0
      %p77 = por %p75, %p76
      %p78 = scmp.ne.s32.totalorder %s70, %s72
      %p79 = scmp.eq.s32.totalorder %s20, 1
      %p80 = por %p78, %p79
      %p81 = scmp.ne.s32.totalorder %s72, %s73
      %p82 = scmp.eq.s32.totalorder %s20, 0
      %p83 = por %p81, %p82
      %p84 = scmp.ne.s32.totalorder %s72, %s73
      %p85 = scmp.eq.s32.totalorder %s21, 1
      %p86 = por %p84, %p85
      %p88 = scmp.ne.s32.totalorder %s73, %s87
      %p89 = scmp.eq.s32.totalorder %s21, 0
      %p90 = por %p88, %p89
      %s92 = sadd.s32 %s91, 1
      %p95 = scmp.eq.s32.totalorder %s15, 1
      %p96 = scmp.ne.s32.totalorder %s91, %s93
      %p97 = scmp.eq.s32.totalorder %s15, 0
      %p98 = por %p96, %p97
      %p99 = scmp.ne.s32.totalorder %s91, %s93
      %p100 = scmp.eq.s32.totalorder %s20, 1
      %p101 = por %p99, %p100
      %p102 = scmp.ne.s32.totalorder %s93, %s94
      %p103 = scmp.eq.s32.totalorder %s20, 0
      %p104 = por %p102, %p103
      %p105 = scmp.ne.s32.totalorder %s93, %s94
      %p106 = scmp.eq.s32.totalorder %s21, 1
      %p107 = por %p105, %p106
      %p109 = scmp.ne.s32.totalorder %s94, %s108
      %p110 = scmp.eq.s32.totalorder %s21, 0
      %p111 = por %p109, %p110
      %s113 = sadd.s32 %s112, 1
      %p116 = scmp.eq.s32.totalorder %s15, 1
      %p117 = scmp.ne.s32.totalorder %s112, %s114
      %p118 = scmp.eq.s32.totalorder %s15, 0
      %p119 = por %p117, %p118
      %p120 = scmp.ne.s32.totalorder %s112, %s114
      %p121 = scmp.eq.s32.totalorder %s20, 1
      %p122 = por %p120, %p121
      %p123 = scmp.ne.s32.totalorder %s114, %s115
      %p124 = scmp.eq.s32.totalorder %s20, 0
      %p125 = por %p123, %p124
      %p126 = scmp.ne.s32.totalorder %s114, %s115
      %p127 = scmp.eq.s32.totalorder %s21, 1
      %p128 = por %p126, %p127
      %p130 = scmp.ne.s32.totalorder %s115, %s129
      %p131 = scmp.eq.s32.totalorder %s21, 0
      %p132 = por %p130, %p131
      %s134 = sadd.s32 %s133, 1
      %p137 = scmp.eq.s32.totalorder %s15, 1
      %p138 = scmp.ne.s32.totalorder %s133, %s135
      %p139 = scmp.eq.s32.totalorder %s15, 0
      %p140 = por %p138, %p139
      %p141 = scmp.ne.s32.totalorder %s133, %s135
      %p142 = scmp.eq.s32.totalorder %s20, 1
      %p143 = por %p141, %p142
      %p144 = scmp.ne.s32.totalorder %s135, %s136
      %p145 = scmp.eq.s32.totalorder %s20, 0
      %p146 = por %p144, %p145
      %p147 = scmp.ne.s32.totalorder %s135, %s136
      %p148 = scmp.eq.s32.totalorder %s21, 1
      %p149 = por %p147, %p148
      %p151 = scmp.ne.s32.totalorder %s136, %s150
      %p152 = scmp.eq.s32.totalorder %s21, 0
      %p153 = por %p151, %p152
      %s154 = ssub.s32 %s15, %s22
      %p155 = scmp.eq.s32.totalorder %s154, 0
      %s157 = sadd.s32 %s156, 1
      %s158 = scalar_select %p155, %s156, %s157
      %p161 = pneg %p155
      %p162 = scmp.eq.s32.totalorder %s15, 1
      %p163 = por %p161, %p162
      %p164 = scmp.ne.s32.totalorder %s156, %s159
      %p165 = scmp.eq.s32.totalorder %s15, 0
      %p166 = por %p164, %p165
      %p167 = scmp.ne.s32.totalorder %s156, %s159
      %p168 = scmp.eq.s32.totalorder %s20, 1
      %p169 = por %p167, %p168
      %p170 = scmp.ne.s32.totalorder %s159, %s160
      %p171 = scmp.eq.s32.totalorder %s20, 0
      %p172 = por %p170, %p171
      %p173 = scmp.ne.s32.totalorder %s159, %s160
      %p174 = scmp.eq.s32.totalorder %s21, 1
      %p175 = por %p173, %p174
      %p177 = scmp.ne.s32.totalorder %s160, %s176
      %p178 = scmp.eq.s32.totalorder %s21, 0
      %p179 = por %p177, %p178
      %p180 = scmp.le.s32.totalorder 1, %s15
      %p181 = scmp.lt.s32.totalorder %s15, 3
      %p182 = pnand %p180, %p181
      %p183 = pneg %p182
      // Predicated region
      $region9: #{tpu_custom_call.1} parent=5 // pred_check
        _
      $region10: #{tpu_custom_call.1} parent=5 // pred_check_branch
        %185 = sbr.rel (%p182) target = $region12
      $region11: #{tpu_custom_call.1} parent=5 // pred_region
        %s186 = ssub.s32 %s15, 1
        // Predicated region
        $region13: #{tpu_custom_call.1} parent=11 // pred_check
          %p187 = pneg %p62
        $region14: #{tpu_custom_call.1} parent=11 // pred_check_branch
          %189 = sbr.rel (%p187) target = $region16
        $region15: #{tpu_custom_call.1} parent=11 // pred_region
          _
        $region16: #{tpu_custom_call.1} parent=11 // pred_fallthru
          _
        // Predicated region
        $region17: #{tpu_custom_call.1} parent=11 // pred_check
          %p190 = pneg %p83
        $region18: #{tpu_custom_call.1} parent=11 // pred_check_branch
          %192 = sbr.rel (%p190) target = $region20
        $region19: #{tpu_custom_call.1} parent=11 // pred_region
          _
        $region20: #{tpu_custom_call.1} parent=11 // pred_fallthru
          _
        // Predicated region
        $region21: #{tpu_custom_call.1} parent=11 // pred_check
          %p193 = pneg %p104
        $region22: #{tpu_custom_call.1} parent=11 // pred_check_branch
          %195 = sbr.rel (%p193) target = $region24
        $region23: #{tpu_custom_call.1} parent=11 // pred_region
          _
        $region24: #{tpu_custom_call.1} parent=11 // pred_fallthru
          _
        // Predicated region
        $region25: #{tpu_custom_call.1} parent=11 // pred_check
          %p196 = pneg %p125
        $region26: #{tpu_custom_call.1} parent=11 // pred_check_branch
          %198 = sbr.rel (%p196) target = $region28
        $region27: #{tpu_custom_call.1} parent=11 // pred_region
          _
        $region28: #{tpu_custom_call.1} parent=11 // pred_fallthru
          _
        // Predicated region
        $region29: #{tpu_custom_call.1} parent=11 // pred_check
          %p199 = pneg %p146
        $region30: #{tpu_custom_call.1} parent=11 // pred_check_branch
          %201 = sbr.rel (%p199) target = $region32
        $region31: #{tpu_custom_call.1} parent=11 // pred_region
          _
        $region32: #{tpu_custom_call.1} parent=11 // pred_fallthru
          _
      $region12: #{tpu_custom_call.1} parent=5 // pred_fallthru
        _
      %p202 = scmp.lt.s32.totalorder %s15, 2
      // Predicated region
      $region33: #{tpu_custom_call.1} parent=5 // pred_check
        %p203 = pneg %p202
      $region34: #{tpu_custom_call.1} parent=5 // pred_check_branch
        %205 = sbr.rel (%p203) target = $region36
      $region35: #{tpu_custom_call.1} parent=5 // pred_region
        // Predicated region
        $region37: #{tpu_custom_call.1} parent=35 // pred_check
          %p206 = pneg %p35
        $region38: #{tpu_custom_call.1} parent=35 // pred_check_branch
          %208 = sbr.rel (%p206) target = $region40
        $region39: #{tpu_custom_call.1} parent=35 // pred_region
          %s209 = smul.u32 8, %s15
          %p210 = scmp.lt.s32.totalorder %s209, 15
          %s211 = scalar_select %p210, %s209, 15
          %s212 = smul.addr %s211, 8
          %s213 = scalar_lea.vmem %s0, %s212
          %s214 = smul.u32 8, %s15
        $region40: #{tpu_custom_call.1} parent=35 // pred_fallthru
          _
      $region36: #{tpu_custom_call.1} parent=5 // pred_fallthru
        _
      %p215 = scmp.le.s32.totalorder 1, %s15
      %p216 = scmp.lt.s32.totalorder %s15, 3
      %p217 = pnand %p215, %p216
      %p218 = pneg %p217
      // Predicated region
      $region41: #{tpu_custom_call.1} parent=5 // pred_check
        _
      $region42: #{tpu_custom_call.1} parent=5 // pred_check_branch
        %220 = sbr.rel (%p217) target = $region44
      $region43: #{tpu_custom_call.1} parent=5 // pred_region
        %s221 = ssub.s32 %s15, 1
        %s222 = smul.u32 8, %s20
        %p223 = scmp.lt.s32.totalorder %s222, 15
        %s224 = scalar_select %p223, %s222, 15
        %s225 = smul.addr %s224, 8
        %s226 = scalar_lea.vmem %s0, %s225
        %p227 = pneg %p41
        %p228 = pneg %p38
        %p229 = pneg %p62
        %p230 = pneg %p59
        %p231 = pneg %p83
        %p232 = pneg %p80
        %p233 = pneg %p104
        %p234 = pneg %p101
        %p235 = pneg %p125
        %p236 = pneg %p122
        %p237 = pneg %p146
        %p238 = pneg %p143
        %p239 = pneg %p172
        %p240 = pneg %p169
        %s241 = sand.u32 %s159, 1
        %s242 = scalar_lea.sflag [#allocation3], %s241
        %s243 = sand.u32 %s159, 1
        %s244 = smul.addr %s243, 64
        %s245 = scalar_lea.vmem [#allocation2], %s244
        %s246 = smul.u32 8, %s20
        %p247 = scmp.lt.s32.totalorder %s246, 15
        %s248 = scalar_select %p247, %s246, 15
        %s249 = smul.addr %s248, 8
        %s250 = scalar_lea.vmem %s0, %s249
        %s251 = smul.u32 8, %s20
        %s252 = smul.u32 8, %s20
        %v253 = vld [vmem:[%s250] sm:$0xff]
        %v254 = vld [vmem:[%s250 + $0x8] sm:$0xff]
        %v255 = vld [vmem:[%s250 + $0x10] sm:$0xff]
        %v256 = vld [vmem:[%s250 + $0x18] sm:$0xff]
        %v257 = vld [vmem:[%s250 + $0x20] sm:$0xff]
        %v258 = vld [vmem:[%s250 + $0x28] sm:$0xff]
        %v259 = vld [vmem:[%s250 + $0x30] sm:$0xff]
        %v260 = vld [vmem:[%s250 + $0x38] sm:$0xff]
        %v261 = vlaneseq
        %v262 = vand.u32 %v261, 127
        %263 = vset.pattern.permute.xlu0 0
        %264 = vperm.xlu0 %263, %v253
        %v265 = vpop.permute.xlu0 %264
        %266 = vset.pattern.permute.xlu0 0
        %267 = vperm.xlu0 %266, %v254
        %v268 = vpop.permute.xlu0 %267
        %269 = vset.pattern.permute.xlu0 0
        %270 = vperm.xlu0 %269, %v255
        %v271 = vpop.permute.xlu0 %270
        %272 = vset.pattern.permute.xlu0 0
        %273 = vperm.xlu0 %272, %v256
        %v274 = vpop.permute.xlu0 %273
        %275 = vset.pattern.permute.xlu0 0
        %276 = vperm.xlu0 %275, %v257
        %v277 = vpop.permute.xlu0 %276
        %278 = vset.pattern.permute.xlu0 0
        %279 = vperm.xlu0 %278, %v258
        %v280 = vpop.permute.xlu0 %279
        %281 = vset.pattern.permute.xlu0 0
        %282 = vperm.xlu0 %281, %v259
        %v283 = vpop.permute.xlu0 %282
        %284 = vset.pattern.permute.xlu0 0
        %285 = vperm.xlu0 %284, %v260
        %v286 = vpop.permute.xlu0 %285
        %vm287 = vcmp.eq.s32.totalorder %v262, %v265
        %vm288 = vcmp.eq.s32.totalorder %v262, %v268
        %vm289 = vcmp.eq.s32.totalorder %v262, %v271
        %vm290 = vcmp.eq.s32.totalorder %v262, %v274
        %vm291 = vcmp.eq.s32.totalorder %v262, %v277
        %vm292 = vcmp.eq.s32.totalorder %v262, %v280
        %vm293 = vcmp.eq.s32.totalorder %v262, %v283
        %vm294 = vcmp.eq.s32.totalorder %v262, %v286
        %v295 = vsel %vm287, 1, 0
        %v296 = vsel %vm288, 1, 0
        %v297 = vsel %vm289, 1, 0
        %v298 = vsel %vm290, 1, 0
        %v299 = vsel %vm291, 1, 0
        %v300 = vsel %vm292, 1, 0
        %v301 = vsel %vm293, 1, 0
        %v302 = vsel %vm294, 1, 0
        %v303 = vcvt.s32.f32 %v295
        %v304 = vcvt.s32.f32 %v296
        %v305 = vcvt.s32.f32 %v297
        %v306 = vcvt.s32.f32 %v298
        %v307 = vcvt.s32.f32 %v299
        %v308 = vcvt.s32.f32 %v300
        %v309 = vcvt.s32.f32 %v301
        %v310 = vcvt.s32.f32 %v302
        %v311 = vld [vmem:[%s1] sm:$0xff]
        %v312 = vld [vmem:[%s2] sm:$0xff]
        %v313 = vld [vmem:[%s2 + $0x8] sm:$0xff]
        %vm314 = vcmask 64512
        %v316 = vsel %vm314, %v303, 0
        %v319 = vsel %vm314, %v304, 0
        %v322 = vsel %vm314, %v305, 0
        %v325 = vsel %vm314, %v306, 0
        %v328 = vsel %vm314, %v307, 0
        %v331 = vsel %vm314, %v308, 0
        %v334 = vsel %vm314, %v309, 0
        %v337 = vsel %vm314, %v310, 0
        %339 = vmatprep.subr.mxu0 0.0
        %340 = vmatpush1.msra.mxu0 %v311
        %341 = vmatprep.subr.mxu0 0.0
        %342 = vmatpush1.msra.mxu0 0.0
        %343 = vmatprep.subr.mxu0 0.0
        %344 = vmatpush1.msra.mxu0 0.0
        %345 = vmatprep.subr.mxu0 0.0
        %346 = vmatpush1.msra.mxu0 0.0
        %347 = vmatprep.subr.mxu0 0.0
        %348 = vmatpush1.msra.mxu0 0.0
        %349 = vmatprep.subr.mxu0 0.0
        %350 = vmatpush1.msra.mxu0 0.0
        %351 = vmatprep.subr.mxu0 0.0
        %352 = vmatpush1.msra.mxu0 0.0
        %353 = vmatprep.subr.mxu0 0.0
        %354 = vmatpush1.msra.mxu0 0.0
        %355 = vmatprep.subr.mxu0 0.0
        %356 = vmatpush1.msra.mxu0 0.0
        %357 = vmatprep.subr.mxu0 0.0
        %358 = vmatpush1.msra.mxu0 0.0
        %359 = vmatprep.subr.mxu0 0.0
        %360 = vmatpush1.msra.mxu0 0.0
        %361 = vmatprep.subr.mxu0 0.0
        %362 = vmatpush1.msra.mxu0 0.0
        %363 = vmatprep.subr.mxu0 0.0
        %364 = vmatpush1.msra.mxu0 0.0
        %365 = vmatprep.subr.mxu0 0.0
        %366 = vmatpush1.msra.mxu0 0.0
        %367 = vmatprep.subr.mxu0 0.0
        %368 = vmatpush1.msra.mxu0 0.0
        %369 = vmatprep.subr.mxu0 0.0
        %370 = vmatpush1.msra.mxu0 0.0
        %371 = vmatprep.subr.mxu0 0.0
        %372 = vmatpush1.msra.mxu0 0.0
        %373 = vmatprep.subr.mxu0 0.0
        %374 = vmatpush1.msra.mxu0 0.0
        %375 = vmatprep.subr.mxu0 0.0
        %376 = vmatpush1.msra.mxu0 0.0
        %377 = vmatprep.subr.mxu0 0.0
        %378 = vmatpush1.msra.mxu0 0.0
        %379 = vmatprep.subr.mxu0 0.0
        %380 = vmatpush1.msra.mxu0 0.0
        %381 = vmatprep.subr.mxu0 0.0
        %382 = vmatpush1.msra.mxu0 0.0
        %383 = vmatprep.subr.mxu0 0.0
        %384 = vmatpush1.msra.mxu0 0.0
        %385 = vmatprep.subr.mxu0 0.0
        %386 = vmatpush1.msra.mxu0 0.0
        %387 = vmatprep.subr.mxu0 0.0
        %388 = vmatpush1.msra.mxu0 0.0
        %389 = vmatprep.subr.mxu0 0.0
        %390 = vmatpush1.msra.mxu0 0.0
        %391 = vmatprep.subr.mxu0 0.0
        %392 = vmatpush1.msra.mxu0 0.0
        %393 = vmatprep.subr.mxu0 0.0
        %394 = vmatpush1.msra.mxu0 0.0
        %395 = vmatprep.subr.mxu0 0.0
        %396 = vmatpush1.msra.mxu0 0.0
        %397 = vmatprep.subr.mxu0 0.0
        %398 = vmatpush1.msra.mxu0 0.0
        %399 = vmatprep.subr.mxu0 0.0
        %400 = vmatpush1.msra.mxu0 0.0
        %401 = vmatprep.subr.mxu0 0.0
        %402 = vmatpush1.msra.mxu0 0.0
        %403 = vmatprep.mubr.f32.mxu0 0.0
        %404 = vmatmul.mubr.f32.gmra.mrb[0].mxu0 %v316
        %v405 = vpop.f32.mrb[0].mxu0
        %v406 = vadd.f32 %v312, %v405
        %v407 = vpop.f32.mrb[0].mxu0
        %408 = vmatprep.mubr.f32.mxu0 0.0
        %409 = vmatmul.mubr.f32.gmra.mrb[0].mxu0 %v319
        %v410 = vpop.f32.mrb[0].mxu0
        %v411 = vadd.f32 %v313, %v410
        %v412 = vpop.f32.mrb[0].mxu0
        %413 = vmatprep.mubr.f32.mxu0 0.0
        %414 = vmatmul.mubr.f32.gmra.mrb[0].mxu0 %v322
        %v415 = vpop.f32.mrb[0].mxu0
        %v416 = vadd.f32 %v312, %v415
        %v417 = vpop.f32.mrb[0].mxu0
        %418 = vmatprep.mubr.f32.mxu0 0.0
        %419 = vmatmul.mubr.f32.gmra.mrb[0].mxu0 %v325
        %v420 = vpop.f32.mrb[0].mxu0
        %v421 = vadd.f32 %v313, %v420
        %v422 = vpop.f32.mrb[0].mxu0
        %423 = vmatprep.mubr.f32.mxu0 0.0
        %424 = vmatmul.mubr.f32.gmra.mrb[0].mxu0 %v328
        %v425 = vpop.f32.mrb[0].mxu0
        %v426 = vadd.f32 %v312, %v425
        %v427 = vpop.f32.mrb[0].mxu0
        %428 = vmatprep.mubr.f32.mxu0 0.0
        %429 = vmatmul.mubr.f32.gmra.mrb[0].mxu0 %v331
        %v430 = vpop.f32.mrb[0].mxu0
        %v431 = vadd.f32 %v313, %v430
        %v432 = vpop.f32.mrb[0].mxu0
        %433 = vmatprep.mubr.f32.mxu0 0.0
        %434 = vmatmul.mubr.f32.gmra.mrb[0].mxu0 %v334
        %v435 = vpop.f32.mrb[0].mxu0
        %v436 = vadd.f32 %v312, %v435
        %v437 = vpop.f32.mrb[0].mxu0
        %438 = vmatprep.mubr.f32.mxu0 0.0
        %439 = vmatmul.mubr.f32.gmra.mrb[0].mxu0 %v337
        %v440 = vpop.f32.mrb[0].mxu0
        %v441 = vadd.f32 %v313, %v440
        %v442 = vpop.f32.mrb[0].mxu0
        %443 = vdwg.mxu0
        %v444 = vld [vmem:[%s3] sm:$0x3]
        %vm445 = vcmp.eq.s32.totalorder %v253, 0
        %vm446 = vcmp.eq.s32.totalorder %v254, 0
        %vm447 = vcmp.eq.s32.totalorder %v255, 0
        %vm448 = vcmp.eq.s32.totalorder %v256, 0
        %vm449 = vcmp.eq.s32.totalorder %v257, 0
        %vm450 = vcmp.eq.s32.totalorder %v258, 0
        %vm451 = vcmp.eq.s32.totalorder %v259, 0
        %vm452 = vcmp.eq.s32.totalorder %v260, 0
        %v453 = vsel %vm445, 1, 0
        %v454 = vsel %vm446, 1, 0
        %v455 = vsel %vm447, 1, 0
        %v456 = vsel %vm448, 1, 0
        %v457 = vsel %vm449, 1, 0
        %v458 = vsel %vm450, 1, 0
        %v459 = vsel %vm451, 1, 0
        %v460 = vsel %vm452, 1, 0
        %461 = vset.pattern.permute.xlu0 1
        %462 = vperm.xlu0 %461, %v453
        %v463 = vpop.permute.xlu0 %462
        %464 = vset.pattern.permute.xlu0 1
        %465 = vperm.xlu0 %464, %v454
        %v466 = vpop.permute.xlu0 %465
        %467 = vset.pattern.permute.xlu0 1
        %468 = vperm.xlu0 %467, %v455
        %v469 = vpop.permute.xlu0 %468
        %470 = vset.pattern.permute.xlu0 1
        %471 = vperm.xlu0 %470, %v456
        %v472 = vpop.permute.xlu0 %471
        %473 = vset.pattern.permute.xlu0 1
        %474 = vperm.xlu0 %473, %v457
        %v475 = vpop.permute.xlu0 %474
        %476 = vset.pattern.permute.xlu0 1
        %477 = vperm.xlu0 %476, %v458
        %v478 = vpop.permute.xlu0 %477
        %479 = vset.pattern.permute.xlu0 1
        %480 = vperm.xlu0 %479, %v459
        %v481 = vpop.permute.xlu0 %480
        %482 = vset.pattern.permute.xlu0 1
        %483 = vperm.xlu0 %482, %v460
        %v484 = vpop.permute.xlu0 %483
        %vm485 = vcmp.eq.s32.totalorder %v463, 1
        %vm486 = vcmp.eq.s32.totalorder %v466, 1
        %vm487 = vcmp.eq.s32.totalorder %v469, 1
        %vm488 = vcmp.eq.s32.totalorder %v472, 1
        %vm489 = vcmp.eq.s32.totalorder %v475, 1
        %vm490 = vcmp.eq.s32.totalorder %v478, 1
        %vm491 = vcmp.eq.s32.totalorder %v481, 1
        %vm492 = vcmp.eq.s32.totalorder %v484, 1
        %v493 = vlaneseq
        %v494 = vshrl.u32 %v493, 7
        %v495 = vsub.s32 0, %v494
        %v496 = vrot.slane %v444, %v495
        %v497 = vlaneseq
        %v498 = vshrl.u32 %v497, 7
        %v499 = vsub.s32 1, %v498
        %v500 = vrot.slane %v444, %v499
        %v501 = vsel %vm485, %v496, %v500
        %v502 = vsel %vm486, %v496, %v500
        %v503 = vsel %vm487, %v496, %v500
        %v504 = vsel %vm488, %v496, %v500
        %v505 = vsel %vm489, %v496, %v500
        %v506 = vsel %vm490, %v496, %v500
        %v507 = vsel %vm491, %v496, %v500
        %v508 = vsel %vm492, %v496, %v500
        %v509 = vadd.f32 %v406, %v501
        %v510 = vadd.f32 %v411, %v502
        %v511 = vadd.f32 %v416, %v503
        %v512 = vadd.f32 %v421, %v504
        %v513 = vadd.f32 %v426, %v505
        %v514 = vadd.f32 %v431, %v506
        %v515 = vadd.f32 %v436, %v507
        %v516 = vadd.f32 %v441, %v508
        %517 = vadd.xlane.f32.xlu0 %v509
        %v518 = vpop.xlane.xlu0 %517
        %519 = vadd.xlane.f32.xlu0 %v510
        %v520 = vpop.xlane.xlu0 %519
        %521 = vadd.xlane.f32.xlu0 %v511
        %v522 = vpop.xlane.xlu0 %521
        %523 = vadd.xlane.f32.xlu0 %v512
        %v524 = vpop.xlane.xlu0 %523
        %525 = vadd.xlane.f32.xlu0 %v513
        %v526 = vpop.xlane.xlu0 %525
        %527 = vadd.xlane.f32.xlu0 %v514
        %v528 = vpop.xlane.xlu0 %527
        %529 = vadd.xlane.f32.xlu0 %v515
        %v530 = vpop.xlane.xlu0 %529
        %531 = vadd.xlane.f32.xlu0 %v516
        %v532 = vpop.xlane.xlu0 %531
        %v533 = vrcp.pop 128.0
        %v534 = vmul.f32 %v518, %v533
        %v535 = vmul.f32 %v520, %v533
        %v536 = vmul.f32 %v522, %v533
        %v537 = vmul.f32 %v524, %v533
        %v538 = vmul.f32 %v526, %v533
        %v539 = vmul.f32 %v528, %v533
        %v540 = vmul.f32 %v530, %v533
        %v541 = vmul.f32 %v532, %v533
        %v542 = vsub.f32 %v509, %v534
        %v543 = vsub.f32 %v510, %v535
        %v544 = vsub.f32 %v511, %v536
        %v545 = vsub.f32 %v512, %v537
        %v546 = vsub.f32 %v513, %v538
        %v547 = vsub.f32 %v514, %v539
        %v548 = vsub.f32 %v515, %v540
        %v549 = vsub.f32 %v516, %v541
        %v550 = vmul.f32 %v542, %v542
        %v551 = vmul.f32 %v543, %v543
        %v552 = vmul.f32 %v544, %v544
        %v553 = vmul.f32 %v545, %v545
        %v554 = vmul.f32 %v546, %v546
        %v555 = vmul.f32 %v547, %v547
        %v556 = vmul.f32 %v548, %v548
        %v557 = vmul.f32 %v549, %v549
        %558 = vadd.xlane.f32.xlu0 %v550
        %v559 = vpop.xlane.xlu0 %558
        %560 = vadd.xlane.f32.xlu0 %v551
        %v561 = vpop.xlane.xlu0 %560
        %562 = vadd.xlane.f32.xlu0 %v552
        %v563 = vpop.xlane.xlu0 %562
        %564 = vadd.xlane.f32.xlu0 %v553
        %v565 = vpop.xlane.xlu0 %564
        %566 = vadd.xlane.f32.xlu0 %v554
        %v567 = vpop.xlane.xlu0 %566
        %568 = vadd.xlane.f32.xlu0 %v555
        %v569 = vpop.xlane.xlu0 %568
        %570 = vadd.xlane.f32.xlu0 %v556
        %v571 = vpop.xlane.xlu0 %570
        %572 = vadd.xlane.f32.xlu0 %v557
        %v573 = vpop.xlane.xlu0 %572
        %v574 = vmul.f32 %v559, %v533
        %v575 = vmul.f32 %v561, %v533
        %v576 = vmul.f32 %v563, %v533
        %v577 = vmul.f32 %v565, %v533
        %v578 = vmul.f32 %v567, %v533
        %v579 = vmul.f32 %v569, %v533
        %v580 = vmul.f32 %v571, %v533
        %v581 = vmul.f32 %v573, %v533
        %v582 = vadd.f32 %v574, 1e-12
        %v583 = vadd.f32 %v575, 1e-12
        %v584 = vadd.f32 %v576, 1e-12
        %v585 = vadd.f32 %v577, 1e-12
        %v586 = vadd.f32 %v578, 1e-12
        %v587 = vadd.f32 %v579, 1e-12
        %v588 = vadd.f32 %v580, 1e-12
        %v589 = vadd.f32 %v581, 1e-12
        %v590 = vrsqrt.pop %v582
        %v591 = vrsqrt.pop %v583
        %v592 = vrsqrt.pop %v584
        %v593 = vrsqrt.pop %v585
        %v594 = vrsqrt.pop %v586
        %v595 = vrsqrt.pop %v587
        %v596 = vrsqrt.pop %v588
        %v597 = vrsqrt.pop %v589
        %v598 = vmul.f32 %v542, %v590
        %v599 = vmul.f32 %v543, %v591
        %v600 = vmul.f32 %v544, %v592
        %v601 = vmul.f32 %v545, %v593
        %v602 = vmul.f32 %v546, %v594
        %v603 = vmul.f32 %v547, %v595
        %v604 = vmul.f32 %v548, %v596
        %v605 = vmul.f32 %v549, %v597
        %v606 = vld [vmem:[%s4] sm:$0x1]
        %v608 = vlaneseq
        %v609 = vshrl.u32 %v608, 7
        %v610 = vsub.s32 0, %v609
        %v611 = vrot.slane %v606, %v610
        %v613 = vmul.f32 %v611, %v598
        %v614 = vmul.f32 %v611, %v599
        %v615 = vmul.f32 %v611, %v600
        %v616 = vmul.f32 %v611, %v601
        %v617 = vmul.f32 %v611, %v602
        %v618 = vmul.f32 %v611, %v603
        %v619 = vmul.f32 %v611, %v604
        %v620 = vmul.f32 %v611, %v605
        %v621 = vld [vmem:[%s5] sm:$0x1]
        %v623 = vlaneseq
        %v624 = vshrl.u32 %v623, 7
        %v625 = vsub.s32 0, %v624
        %v626 = vrot.slane %v621, %v625
        %v628 = vadd.f32 %v613, %v626
        %v629 = vadd.f32 %v614, %v626
        %v630 = vadd.f32 %v615, %v626
        %v631 = vadd.f32 %v616, %v626
        %v632 = vadd.f32 %v617, %v626
        %v633 = vadd.f32 %v618, %v626
        %v634 = vadd.f32 %v619, %v626
        %v635 = vadd.f32 %v620, %v626
        %636 = vst [vmem:[%s245] sm:$0xff] %v628
        %637 = vst [vmem:[%s245 + $0x8] sm:$0xff] %v629
        %638 = vst [vmem:[%s245 + $0x10] sm:$0xff] %v630
        %639 = vst [vmem:[%s245 + $0x18] sm:$0xff] %v631
        %640 = vst [vmem:[%s245 + $0x20] sm:$0xff] %v632
        %641 = vst [vmem:[%s245 + $0x28] sm:$0xff] %v633
        %642 = vst [vmem:[%s245 + $0x30] sm:$0xff] %v634
        %643 = vst [vmem:[%s245 + $0x38] sm:$0xff] %v635
        %s644 = sand.u32 %s159, 1
        %s645 = scalar_lea.sflag [#allocation3], %s644
        %s646 = sand.u32 %s159, 1
        %s647 = smul.addr %s646, 64
        %s648 = scalar_lea.vmem [#allocation2], %s647
        // Predicated region
        $region45: #{tpu_custom_call.1} parent=43 // pred_check
          %p649 = pneg %p169
        $region46: #{tpu_custom_call.1} parent=43 // pred_check_branch
          %651 = sbr.rel (%p649) target = $region48
        $region47: #{tpu_custom_call.1} parent=43 // pred_region
          %s652 = smul.u32 8, %s20
          %s654 = ssub.s32 1024, 1024
          %655 = vsyncadd %s645, %s654
          %s656 = smul.addr %s652, 128
          %s657 = scalar_lea.hbm %s6, %s656
          %s658 = sshll.u32 %s648, 4
          %s659 = int_to_ptr.vmem [resolvable:$true] %s658
          %664 = dma.vmem_to_hbm [thread:$0]  %s659, 1024, %s657, %s645, 128, 128, 8
        $region48: #{tpu_custom_call.1} parent=43 // pred_fallthru
          _
      $region44: #{tpu_custom_call.1} parent=5 // pred_fallthru
        _
      %p665 = scmp.le.s32.totalorder 2, %s15
      // Predicated region
      $region49: #{tpu_custom_call.1} parent=5 // pred_check
        %p666 = pneg %p665
      $region50: #{tpu_custom_call.1} parent=5 // pred_check_branch
        %668 = sbr.rel (%p666) target = $region52
      $region51: #{tpu_custom_call.1} parent=5 // pred_region
        %s669 = ssub.s32 %s15, 2
        // Predicated region
        $region53: #{tpu_custom_call.1} parent=51 // pred_check
          %p670 = pneg %p175
        $region54: #{tpu_custom_call.1} parent=51 // pred_check_branch
          %672 = sbr.rel (%p670) target = $region56
        $region55: #{tpu_custom_call.1} parent=51 // pred_region
          %s673 = sand.u32 %s160, 1
          %s674 = scalar_lea.sflag [#allocation3], %s673
          %s675 = sand.u32 %s160, 1
          %s676 = smul.addr %s675, 64
          %s677 = scalar_lea.vmem [#allocation2], %s676
          %678 = dma.done %s674, 1024
        $region56: #{tpu_custom_call.1} parent=51 // pred_fallthru
          _
      $region52: #{tpu_custom_call.1} parent=5 // pred_fallthru
        _
    $region6: #{tpu_custom_call.1} parent=1 // loop_footer
      %s19 = sadd.s32 1, %s15
    $region7: #{tpu_custom_call.1} parent=1 // loop_footer_branch
      %14 = sbr.rel target = $region3
    $region8: #{tpu_custom_call.1} parent=1 // loop_exit
      _
    %679 = vsyncpa [#allocation3], 1
    %s680 = scalar_lea.sflag [#allocation3], 1
    %681 = vsyncpa %s680, 1

</llo_original>
